<compile_context>
chip_gen: v7x
topology: tpu7x:2x2x1
jax: 0.10.0
libtpu: 0.0.40
codegen_flags: <defaults>
</compile_context>

<pallas_src>
import functools

import jax
import jax.numpy as jnp
from jax.experimental import pallas as pl
from jax.experimental.pallas import tpu as pltpu

_EPS = 1e-12  # matches torch.nn.functional.normalize default


def _contrastive_kernel(text_ref, graph_ref, *refs, tile_rows, tile_cols,
                        temperature, mm_dtype, return_similarity):
    if return_similarity:
        (sim_ref, loss_ref, correct_ref,
         q_scr, m_scr, l_scr, diag_scr, arg_scr) = refs
    else:
        (loss_ref, correct_ref,
         q_scr, m_scr, l_scr, diag_scr, arg_scr) = refs
        sim_ref = None

    i = pl.program_id(0)   # row tile   ("parallel": megacore shards this)
    j = pl.program_id(1)   # col tile   ("arbitrary": online reduction axis)
    inv_t = 1.0 / temperature

    # --- first column tile of each row tile: normalize text rows once, fold
    #     the 1/T scale in, store in the matmul dtype, reset accumulators. --
    @pl.when(j == 0)
    def _init():
        t = text_ref[...].astype(jnp.float32)                        # (TR, D)
        ssq = jnp.sum(t * t, axis=1, keepdims=True)
        scale = jax.lax.rsqrt(jnp.maximum(ssq, _EPS * _EPS)) * inv_t  # EUP
        q_scr[...] = (t * scale).astype(q_scr.dtype)
        m_scr[...] = jnp.full(m_scr.shape, -jnp.inf, m_scr.dtype)
        l_scr[...] = jnp.zeros(l_scr.shape, l_scr.dtype)
        diag_scr[...] = jnp.zeros(diag_scr.shape, diag_scr.dtype)
        arg_scr[...] = jnp.zeros(arg_scr.shape, arg_scr.dtype)

    # --- normalize this column tile of graph embeddings. -------------------
    g = graph_ref[...].astype(jnp.float32)                            # (TC, D)
    gssq = jnp.sum(g * g, axis=1, keepdims=True)
    g = (g * jax.lax.rsqrt(jnp.maximum(gssq, _EPS * _EPS))).astype(mm_dtype)

    # similarity tile: contract the last dim of both operands (A @ B^T,
    # flash-attention orientation); f32 accumulation on the MXU.
    sim = jax.lax.dot_general(
        q_scr[...], g,
        dimension_numbers=(((1,), (1,)), ((), ())),
        preferred_element_type=jnp.float32)                           # (TR, TC)

    if sim_ref is not None:
        sim_ref[...] = sim.astype(sim_ref.dtype)

    col_ids = jax.lax.broadcasted_iota(jnp.int32, sim.shape, 1) + j * tile_cols
    row_ids = jax.lax.broadcasted_iota(jnp.int32, sim.shape, 0) + i * tile_rows

    # positive (diagonal) logits: only tiles straddling the diagonal can
    # contribute, so skip the compare/select/XLU-reduce everywhere else.
    row_lo = i * tile_rows
    col_lo = j * tile_cols
    straddles_diag = jnp.logical_and(row_lo < col_lo + tile_cols,
                                     col_lo < row_lo + tile_rows)

    @pl.when(straddles_diag)
    def _diag():
        diag_scr[...] += jnp.sum(jnp.where(col_ids == row_ids, sim, 0.0),
                                 axis=1, keepdims=True)

    # online log-sum-exp + running argmax (int32; jnp.argmax tie semantics:
    # strict '>' across tiles, min index within a tile).
    tile_max = jnp.max(sim, axis=1, keepdims=True)                    # (TR, 1)
    tile_arg = jnp.min(
        jnp.where(sim == tile_max, col_ids, jnp.int32(2**31 - 1)),
        axis=1, keepdims=True)                                        # (TR, 1)

    m_old = m_scr[...]
    arg_scr[...] = jnp.where(tile_max > m_old, tile_arg, arg_scr[...])
    m_new = jnp.maximum(m_old, tile_max)
    l_scr[...] = (l_scr[...] * jnp.exp(m_old - m_new)
                  + jnp.sum(jnp.exp(sim - m_new), axis=1, keepdims=True))
    m_scr[...] = m_new

    # --- last column tile: emit per-row partials (reduced in the wrapper so
    #     the two v7x TensorCores never race on a shared scalar). -----------
    @pl.when(j == pl.num_programs(1) - 1)
    def _finalize():
        lse = m_scr[...] + jnp.log(l_scr[...])                        # (TR, 1)
        loss_ref[...] = lse - diag_scr[...]
        row_idx = (jax.lax.broadcasted_iota(jnp.int32, arg_scr.shape, 0)
                   + i * tile_rows)
        correct_ref[...] = (arg_scr[...] == row_idx).astype(jnp.float32)


def _vmem_capacity_bytes() -> int:
    cap = 64 << 20  # conservative fallback (v7x per-TC VMEM)
    try:
        cap = int(pltpu.get_tpu_info().vmem_capacity_bytes)
    except Exception:
        pass
    return cap


def _pick_tiles(batch, dim, in_bytes, mm_bytes, sim_bytes, want_sim, budget):
    """Largest aligned (tile_rows, tile_cols) that fits the VMEM budget.

    Prefers >= 2 row tiles (so the 'parallel' row axis can shard across the
    two v7x TensorCores, and residency stops scaling with B) and the widest
    lane-aligned column tile (unmasked sim stores, fewer per-step overheads).
    """
    def usage(tr, tc):
        u = 2 * tr * dim * in_bytes          # text block   (double-buffered)
        u += 2 * tc * dim * in_bytes         # graph block  (double-buffered)
        u += tr * dim * mm_bytes             # q_scr (normalized text, mm dtype)
        u += 4 * tr * 128 * 4                # (TR,1) accumulators, lane-padded
        u += 4 * tr * 128 * 4                # per-row loss/acc output blocks
        if want_sim:
            u += 2 * tr * tc * sim_bytes     # similarity block (double-buffered)
        return u

    col_cands = [c for c in (512, 256, 128) if batch % c == 0] or [batch]
    row_cands = [batch // k for k in (2, 4, 8, 16, 32, 64, 128)
                 if batch % k == 0 and (batch // k) % 8 == 0]
    row_cands.append(batch)  # single-row-tile fallback (small batches)

    for tr in row_cands:
        for tc in col_cands:
            if usage(tr, tc) <= budget:
                return tr, tc
    return row_cands[-1], col_cands[-1]


def contrastive_loss(text_embeddings, graph_embeddings, labels=None, *,
                     temperature: float = 0.07, reduction: str = "mean",
                     return_similarity: bool = True,
                     similarity_dtype=jnp.float32,
                     use_bf16_matmul=None,
                     tile_rows=None, tile_cols=None):
    assert reduction in ("mean", "sum")
    # TODO(synk): explicit `labels` (supervised soft-label path of the torch
    # module) is not implemented in the kernel; identity-labels path only.
    assert labels is None, "explicit labels not supported by the Pallas kernel"

    B, D = text_embeddings.shape
    Bg, Dg = graph_embeddings.shape
    assert D == Dg and B == Bg, "expected matching (batch, dim) embeddings"

    inputs_bf16 = (text_embeddings.dtype == jnp.bfloat16
                   and graph_embeddings.dtype == jnp.bfloat16)
    if use_bf16_matmul is None:
        # bf16 inputs take the fast MXU path; f32 inputs default to an exact
        # f32 logit path (opt into bf16 via use_bf16_matmul=True on v5e/v6e).
        use_bf16_matmul = inputs_bf16
    mm_dtype = jnp.bfloat16 if use_bf16_matmul else jnp.float32

    in_bytes = max(jnp.dtype(text_embeddings.dtype).itemsize,
                   jnp.dtype(graph_embeddings.dtype).itemsize)
    mm_bytes = jnp.dtype(mm_dtype).itemsize
    sim_bytes = jnp.dtype(similarity_dtype).itemsize

    vmem_cap = _vmem_capacity_bytes()
    auto_tr, auto_tc = _pick_tiles(B, D, in_bytes, mm_bytes, sim_bytes,
                                   return_similarity, int(vmem_cap * 0.6))
    tile_rows = auto_tr if tile_rows is None else int(tile_rows)
    tile_cols = auto_tc if tile_cols is None else int(tile_cols)
    assert B % tile_rows == 0 and B % tile_cols == 0, "tiles must divide batch"
    grid = (B // tile_rows, B // tile_cols)

    kernel = functools.partial(
        _contrastive_kernel,
        tile_rows=tile_rows, tile_cols=tile_cols,
        temperature=float(temperature),
        mm_dtype=mm_dtype,
        return_similarity=return_similarity)

    out_shape, out_specs = [], []
    if return_similarity:
        out_shape.append(jax.ShapeDtypeStruct((B, B), similarity_dtype))
        out_specs.append(pl.BlockSpec((tile_rows, tile_cols),
                                      lambda i, j: (i, j)))
    out_shape += [jax.ShapeDtypeStruct((B, 1), jnp.float32),   # per-row loss
                  jax.ShapeDtypeStruct((B, 1), jnp.float32)]   # per-row hit
    out_specs += [pl.BlockSpec((tile_rows, 1), lambda i, j: (i, 0)),
                  pl.BlockSpec((tile_rows, 1), lambda i, j: (i, 0))]

    results = pl.pallas_call(
        kernel,
        grid=grid,
        in_specs=[
            # text: index map ignores j -> DMA'd once per row tile.
            pl.BlockSpec((tile_rows, D), lambda i, j: (i, 0)),
            # graph: streamed column tiles (Pallas double-buffers the DMA).
            pl.BlockSpec((tile_cols, D), lambda i, j: (j, 0)),
        ],
        out_specs=tuple(out_specs),
        out_shape=tuple(out_shape),
        scratch_shapes=[
            pltpu.VMEM((tile_rows, D), mm_dtype),     # normalized text * 1/T
            pltpu.VMEM((tile_rows, 1), jnp.float32),  # running row max (m)
            pltpu.VMEM((tile_rows, 1), jnp.float32),  # running sum of exp (l)
            pltpu.VMEM((tile_rows, 1), jnp.float32),  # diagonal (positive) logit
            pltpu.VMEM((tile_rows, 1), jnp.int32),    # running argmax column
        ],
        compiler_params=pltpu.CompilerParams(
            dimension_semantics=("parallel", "arbitrary"),
            vmem_limit_bytes=int(vmem_cap * 0.9)),
    )(text_embeddings, graph_embeddings)

    if return_similarity:
        sim, per_row_loss, per_row_correct = results
    else:
        per_row_loss, per_row_correct = results
        sim = None

    loss = jnp.sum(per_row_loss)
    if reduction == "mean":
        loss = loss / B
    accuracy = jnp.mean(per_row_correct)

    out = {"loss": loss, "accuracy": accuracy}
    if sim is not None:
        out["similarity"] = sim
    return out


def _reference(text, graph, temperature=0.07, reduction="mean"):
    """Pure-JAX mirror of the PyTorch forward (labels=None)."""
    t = text.astype(jnp.float32)
    g = graph.astype(jnp.float32)
    t = t / jnp.maximum(jnp.linalg.norm(t, axis=1, keepdims=True), _EPS)
    g = g / jnp.maximum(jnp.linalg.norm(g, axis=1, keepdims=True), _EPS)
    sim = (t @ g.T) / temperature
    b = sim.shape[0]
    labels = jnp.eye(b, dtype=jnp.float32)
    log_probs = jax.nn.log_softmax(sim, axis=1)
    loss = -jnp.sum(labels * log_probs)
    if reduction == "mean":
        loss = loss / b
    preds = jnp.argmax(sim, axis=1)
    targets = jnp.argmax(labels, axis=1)
    acc = jnp.mean((preds == targets).astype(jnp.float32))
    return {"loss": loss, "accuracy": acc, "similarity": sim}


if __name__ == "__main__":
    k1, k2, k3, k4 = jax.random.split(jax.random.PRNGKey(0), 4)

    # 1) Small config (single tile) — module-consistent shapes, f32 path.
    B, D = 8, 32
    text = jax.random.normal(k1, (B, D), dtype=jnp.float32)
    graph = jax.random.normal(k2, (B, D), dtype=jnp.float32)
    out = contrastive_loss(text, graph, temperature=0.07, reduction="mean")
    jax.block_until_ready(out)
    ref = _reference(text, graph)
    assert jnp.allclose(out["loss"], ref["loss"], atol=1e-4, rtol=1e-4)
    assert jnp.allclose(out["accuracy"], ref["accuracy"], atol=1e-6)
    assert jnp.allclose(out["similarity"], ref["similarity"],
                        atol=1e-4, rtol=1e-4)

    # 2) Forced 2x2 tile grid: exercises the parallel row axis and the
    #    streaming online-LSE / int32-argmax column path.
    B2, D2 = 256, 128
    text2 = jax.random.normal(k3, (B2, D2), dtype=jnp.float32)
    graph2 = jax.random.normal(k4, (B2, D2), dtype=jnp.float32)
    ref2 = _reference(text2, graph2)
    out2 = contrastive_loss(text2, graph2, tile_rows=128, tile_cols=128)
    jax.block_until_ready(out2)
    assert jnp.allclose(out2["loss"], ref2["loss"], atol=1e-4, rtol=1e-4)
    assert jnp.allclose(out2["accuracy"], ref2["accuracy"], atol=1e-6)
    assert jnp.allclose(out2["similarity"], ref2["similarity"],
                        atol=1e-4, rtol=1e-4)

    # 3) Auto-tiled, loss-only training path (no similarity HBM writeback).
    out3 = contrastive_loss(text2, graph2, return_similarity=False)
    jax.block_until_ready(out3)
    assert jnp.allclose(out3["loss"], ref2["loss"], atol=1e-4, rtol=1e-4)
    assert jnp.allclose(out3["accuracy"], ref2["accuracy"], atol=1e-6)

    # 4) bf16 inputs (fast MXU path, bf16 q_scr) on correlated embeddings so
    #    the argmax is decisive; loose tolerance for bf16 logit rounding.
    noise = 0.05 * jax.random.normal(jax.random.PRNGKey(1), (B2, D2),
                                     dtype=jnp.float32)
    graph_c = text2 + noise
    ref4 = _reference(text2, graph_c)
    out4 = contrastive_loss(text2.astype(jnp.bfloat16),
                            graph_c.astype(jnp.bfloat16),
                            tile_rows=128, tile_cols=128)
    jax.block_until_ready(out4)
    assert jnp.allclose(out4["loss"], ref4["loss"], atol=5e-2, rtol=5e-2)
    assert jnp.allclose(out4["accuracy"], ref4["accuracy"], atol=1e-6)

    # 5) f32 inputs with the opt-in bf16 MXU path (v5e throughput option).
    out5 = contrastive_loss(text2, graph_c, use_bf16_matmul=True,
                            return_similarity=False)
    jax.block_until_ready(out5)
    assert jnp.allclose(out5["loss"], ref4["loss"], atol=5e-2, rtol=5e-2)
    assert jnp.allclose(out5["accuracy"], ref4["accuracy"], atol=1e-6)

    print("KERNEL_OK")
</pallas_src>

<mosaic_0001>
module attributes {stable_mosaic.version = 11 : i64} {
  func.func @_contrastive_kernel(%arg0: i32, %arg1: i32, %arg2: memref<8x32xf32, #tpu.memory_space<vmem>>, %arg3: memref<8x32xf32, #tpu.memory_space<vmem>>, %arg4: memref<8x8xf32, #tpu.memory_space<vmem>>, %arg5: memref<8x1xf32, #tpu.memory_space<vmem>>, %arg6: memref<8x1xf32, #tpu.memory_space<vmem>>, %arg7: memref<8x32xf32, #tpu.memory_space<vmem>>, %arg8: memref<8x1xf32, #tpu.memory_space<vmem>>, %arg9: memref<8x1xf32, #tpu.memory_space<vmem>>, %arg10: memref<8x1xf32, #tpu.memory_space<vmem>>, %arg11: memref<8x1xi32, #tpu.memory_space<vmem>>) attributes {dimension_semantics = [#tpu.dimension_semantics<parallel>, #tpu.dimension_semantics<arbitrary>], iteration_bounds = array<i64: 1, 1>, scalar_prefetch = 0 : i64, scratch_operands = 5 : i64, tpu.core_type = #tpu.core_type<tc>, window_params = [{transform_indices = @transform_0, window_bounds = array<i64: 8, 32>}, {transform_indices = @transform_1, window_bounds = array<i64: 8, 32>}, {transform_indices = @transform_2, window_bounds = array<i64: 8, 8>}, {transform_indices = @transform_3, window_bounds = array<i64: 8, 1>}, {transform_indices = @transform_4, window_bounds = array<i64: 8, 1>}]} {
    %c0_i32 = arith.constant 0 : i32
    %0 = arith.cmpi eq, %arg1, %c0_i32 : i32
    %1 = arith.extui %0 : i1 to i32
    %c0_i32_0 = arith.constant 0 : i32
    %2 = arith.cmpi ne, %1, %c0_i32_0 : i32
    scf.if %2 {
      %c0_31 = arith.constant 0 : index
      %c0_32 = arith.constant 0 : index
      %61 = vector.load %arg2[%c0_31, %c0_32] : memref<8x32xf32, #tpu.memory_space<vmem>>, vector<8x32xf32>
      %62 = arith.mulf %61, %61 : vector<8x32xf32>
      %cst_33 = arith.constant dense<0.000000e+00> : vector<8xf32>
      %63 = vector.multi_reduction <add>, %62, %cst_33 [1] : vector<8x32xf32> to vector<8xf32>
      %64 = vector.shape_cast %63 : vector<8xf32> to vector<8x1xf32>
      %cst_34 = arith.constant 1.000000e-24 : f32
      %65 = vector.broadcast %cst_34 : f32 to vector<8x1xf32>
      %66 = arith.maximumf %64, %65 : vector<8x1xf32>
      %67 = math.rsqrt %66 : vector<8x1xf32>
      %cst_35 = arith.constant 14.2857141 : f32
      %68 = vector.broadcast %cst_35 : f32 to vector<8x1xf32>
      %69 = arith.mulf %67, %68 : vector<8x1xf32>
      %70 = vector.broadcast %69 : vector<8x1xf32> to vector<8x32xf32>
      %71 = arith.mulf %61, %70 : vector<8x32xf32>
      %c0_36 = arith.constant 0 : index
      %c0_37 = arith.constant 0 : index
      %72 = vector.load %arg7[%c0_36, %c0_37] : memref<8x32xf32, #tpu.memory_space<vmem>>, vector<8x32xf32>
      tpu.vector_store %arg7[%c0_36, %c0_37], %71 {strides = array<i32>} : memref<8x32xf32, #tpu.memory_space<vmem>>, vector<8x32xf32>,
      %cst_38 = arith.constant 0xFF800000 : f32
      %73 = vector.broadcast %cst_38 : f32 to vector<8x1xf32>
      %c0_39 = arith.constant 0 : index
      %c0_40 = arith.constant 0 : index
      %74 = vector.load %arg8[%c0_39, %c0_40] : memref<8x1xf32, #tpu.memory_space<vmem>>, vector<8x1xf32>
      tpu.vector_store %arg8[%c0_39, %c0_40], %73 {strides = array<i32>} : memref<8x1xf32, #tpu.memory_space<vmem>>, vector<8x1xf32>,
      %cst_41 = arith.constant 0.000000e+00 : f32
      %75 = vector.broadcast %cst_41 : f32 to vector<8x1xf32>
      %c0_42 = arith.constant 0 : index
      %c0_43 = arith.constant 0 : index
      %76 = vector.load %arg9[%c0_42, %c0_43] : memref<8x1xf32, #tpu.memory_space<vmem>>, vector<8x1xf32>
      tpu.vector_store %arg9[%c0_42, %c0_43], %75 {strides = array<i32>} : memref<8x1xf32, #tpu.memory_space<vmem>>, vector<8x1xf32>,
      %cst_44 = arith.constant 0.000000e+00 : f32
      %77 = vector.broadcast %cst_44 : f32 to vector<8x1xf32>
      %c0_45 = arith.constant 0 : index
      %c0_46 = arith.constant 0 : index
      %78 = vector.load %arg10[%c0_45, %c0_46] : memref<8x1xf32, #tpu.memory_space<vmem>>, vector<8x1xf32>
      tpu.vector_store %arg10[%c0_45, %c0_46], %77 {strides = array<i32>} : memref<8x1xf32, #tpu.memory_space<vmem>>, vector<8x1xf32>,
      %c0_i32_47 = arith.constant 0 : i32
      %79 = vector.broadcast %c0_i32_47 : i32 to vector<8x1xi32>
      %c0_48 = arith.constant 0 : index
      %c0_49 = arith.constant 0 : index
      %80 = vector.load %arg11[%c0_48, %c0_49] : memref<8x1xi32, #tpu.memory_space<vmem>>, vector<8x1xi32>
      tpu.vector_store %arg11[%c0_48, %c0_49], %79 {strides = array<i32>} : memref<8x1xi32, #tpu.memory_space<vmem>>, vector<8x1xi32>,
    } else {
    }
    %c0 = arith.constant 0 : index
    %c0_1 = arith.constant 0 : index
    %3 = vector.load %arg3[%c0, %c0_1] : memref<8x32xf32, #tpu.memory_space<vmem>>, vector<8x32xf32>
    %4 = arith.mulf %3, %3 : vector<8x32xf32>
    %cst = arith.constant dense<0.000000e+00> : vector<8xf32>
    %5 = vector.multi_reduction <add>, %4, %cst [1] : vector<8x32xf32> to vector<8xf32>
    %6 = vector.shape_cast %5 : vector<8xf32> to vector<8x1xf32>
    %cst_2 = arith.constant 1.000000e-24 : f32
    %7 = vector.broadcast %cst_2 : f32 to vector<8x1xf32>
    %8 = arith.maximumf %6, %7 : vector<8x1xf32>
    %9 = math.rsqrt %8 : vector<8x1xf32>
    %10 = vector.broadcast %9 : vector<8x1xf32> to vector<8x32xf32>
    %11 = arith.mulf %3, %10 : vector<8x32xf32>
    %c0_3 = arith.constant 0 : index
    %c0_4 = arith.constant 0 : index
    %12 = vector.load %arg7[%c0_3, %c0_4] : memref<8x32xf32, #tpu.memory_space<vmem>>, vector<8x32xf32>
    %cst_5 = arith.constant dense<0.000000e+00> : vector<8x8xf32>
    %13 = tpu.matmul %12, %11, %cst_5 {dimension_numbers = #tpu.dot_dimension_numbers<[1], [1], [0], [0], [0, 0, 1, 0], [], []>} : vector<8x32xf32>, vector<8x32xf32>, vector<8x8xf32> -> vector<8x8xf32>
    %c0_6 = arith.constant 0 : index
    %c0_7 = arith.constant 0 : index
    %14 = vector.load %arg4[%c0_6, %c0_7] : memref<8x8xf32, #tpu.memory_space<vmem>>, vector<8x8xf32>
    tpu.vector_store %arg4[%c0_6, %c0_7], %13 {strides = array<i32>} : memref<8x8xf32, #tpu.memory_space<vmem>>, vector<8x8xf32>,
    %15 = tpu.iota {dimensions = array<i32: 1>} : vector<8x8xi32>
    %c8_i32 = arith.constant 8 : i32
    %16 = arith.muli %arg1, %c8_i32 : i32
    %17 = vector.broadcast %16 : i32 to vector<8x8xi32>
    %18 = arith.addi %15, %17 : vector<8x8xi32>
    %19 = tpu.iota {dimensions = array<i32: 0>} : vector<8x8xi32>
    %c8_i32_8 = arith.constant 8 : i32
    %20 = arith.muli %arg0, %c8_i32_8 : i32
    %21 = vector.broadcast %20 : i32 to vector<8x8xi32>
    %22 = arith.addi %19, %21 : vector<8x8xi32>
    %c8_i32_9 = arith.constant 8 : i32
    %23 = arith.muli %arg0, %c8_i32_9 : i32
    %c8_i32_10 = arith.constant 8 : i32
    %24 = arith.muli %arg1, %c8_i32_10 : i32
    %c8_i32_11 = arith.constant 8 : i32
    %25 = arith.addi %24, %c8_i32_11 : i32
    %26 = arith.cmpi slt, %23, %25 : i32
    %c8_i32_12 = arith.constant 8 : i32
    %27 = arith.addi %23, %c8_i32_12 : i32
    %28 = arith.cmpi slt, %24, %27 : i32
    %29 = arith.andi %26, %28 : i1
    %30 = arith.extui %29 : i1 to i32
    %c0_i32_13 = arith.constant 0 : i32
    %31 = arith.cmpi ne, %30, %c0_i32_13 : i32
    scf.if %31 {
      %c0_31 = arith.constant 0 : index
      %c0_32 = arith.constant 0 : index
      %61 = vector.load %arg10[%c0_31, %c0_32] : memref<8x1xf32, #tpu.memory_space<vmem>>, vector<8x1xf32>
      %62 = arith.cmpi eq, %18, %22 : vector<8x8xi32>
      %cst_33 = arith.constant 0.000000e+00 : f32
      %63 = vector.broadcast %cst_33 : f32 to vector<8x8xf32>
      %64 = arith.select %62, %13, %63 : vector<8x8xi1>, vector<8x8xf32>
      %cst_34 = arith.constant dense<0.000000e+00> : vector<8xf32>
      %65 = vector.multi_reduction <add>, %64, %cst_34 [1] : vector<8x8xf32> to vector<8xf32>
      %66 = vector.shape_cast %65 : vector<8xf32> to vector<8x1xf32>
      %67 = arith.addf %61, %66 : vector<8x1xf32>
      %c0_35 = arith.constant 0 : index
      %c0_36 = arith.constant 0 : index
      %68 = vector.load %arg10[%c0_35, %c0_36] : memref<8x1xf32, #tpu.memory_space<vmem>>, vector<8x1xf32>
      tpu.vector_store %arg10[%c0_35, %c0_36], %67 {strides = array<i32>} : memref<8x1xf32, #tpu.memory_space<vmem>>, vector<8x1xf32>,
    } else {
    }
    %cst_14 = arith.constant dense<0xFF800000> : vector<8xf32>
    %32 = vector.multi_reduction <maximumf>, %13, %cst_14 [1] : vector<8x8xf32> to vector<8xf32>
    %33 = vector.shape_cast %32 : vector<8xf32> to vector<8x1xf32>
    %34 = vector.broadcast %33 : vector<8x1xf32> to vector<8x8xf32>
    %35 = arith.cmpf oeq, %13, %34 : vector<8x8xf32>
    %c2147483647_i32 = arith.constant 2147483647 : i32
    %36 = vector.broadcast %c2147483647_i32 : i32 to vector<8x8xi32>
    %37 = arith.select %35, %18, %36 : vector<8x8xi1>, vector<8x8xi32>
    %cst_15 = arith.constant dense<2147483647> : vector<8xi32>
    %38 = vector.multi_reduction <minsi>, %37, %cst_15 [1] : vector<8x8xi32> to vector<8xi32>
    %39 = vector.shape_cast %38 : vector<8xi32> to vector<8x1xi32>
    %c0_16 = arith.constant 0 : index
    %c0_17 = arith.constant 0 : index
    %40 = vector.load %arg8[%c0_16, %c0_17] : memref<8x1xf32, #tpu.memory_space<vmem>>, vector<8x1xf32>
    %41 = arith.cmpf ogt, %33, %40 : vector<8x1xf32>
    %c0_18 = arith.constant 0 : index
    %c0_19 = arith.constant 0 : index
    %42 = vector.load %arg11[%c0_18, %c0_19] : memref<8x1xi32, #tpu.memory_space<vmem>>, vector<8x1xi32>
    %43 = arith.select %41, %39, %42 : vector<8x1xi1>, vector<8x1xi32>
    %c0_20 = arith.constant 0 : index
    %c0_21 = arith.constant 0 : index
    %44 = vector.load %arg11[%c0_20, %c0_21] : memref<8x1xi32, #tpu.memory_space<vmem>>, vector<8x1xi32>
    tpu.vector_store %arg11[%c0_20, %c0_21], %43 {strides = array<i32>} : memref<8x1xi32, #tpu.memory_space<vmem>>, vector<8x1xi32>,
    %45 = arith.maximumf %40, %33 : vector<8x1xf32>
    %c0_22 = arith.constant 0 : index
    %c0_23 = arith.constant 0 : index
    %46 = vector.load %arg9[%c0_22, %c0_23] : memref<8x1xf32, #tpu.memory_space<vmem>>, vector<8x1xf32>
    %47 = arith.subf %40, %45 : vector<8x1xf32>
    %48 = math.exp %47 : vector<8x1xf32>
    %49 = arith.mulf %46, %48 : vector<8x1xf32>
    %50 = vector.broadcast %45 : vector<8x1xf32> to vector<8x8xf32>
    %51 = arith.subf %13, %50 : vector<8x8xf32>
    %52 = math.exp %51 : vector<8x8xf32>
    %cst_24 = arith.constant dense<0.000000e+00> : vector<8xf32>
    %53 = vector.multi_reduction <add>, %52, %cst_24 [1] : vector<8x8xf32> to vector<8xf32>
    %54 = vector.shape_cast %53 : vector<8xf32> to vector<8x1xf32>
    %55 = arith.addf %49, %54 : vector<8x1xf32>
    %c0_25 = arith.constant 0 : index
    %c0_26 = arith.constant 0 : index
    %56 = vector.load %arg9[%c0_25, %c0_26] : memref<8x1xf32, #tpu.memory_space<vmem>>, vector<8x1xf32>
    tpu.vector_store %arg9[%c0_25, %c0_26], %55 {strides = array<i32>} : memref<8x1xf32, #tpu.memory_space<vmem>>, vector<8x1xf32>,
    %c0_27 = arith.constant 0 : index
    %c0_28 = arith.constant 0 : index
    %57 = vector.load %arg8[%c0_27, %c0_28] : memref<8x1xf32, #tpu.memory_space<vmem>>, vector<8x1xf32>
    tpu.vector_store %arg8[%c0_27, %c0_28], %45 {strides = array<i32>} : memref<8x1xf32, #tpu.memory_space<vmem>>, vector<8x1xf32>,
    %c0_i32_29 = arith.constant 0 : i32
    %58 = arith.cmpi eq, %arg1, %c0_i32_29 : i32
    %59 = arith.extui %58 : i1 to i32
    %c0_i32_30 = arith.constant 0 : i32
    %60 = arith.cmpi ne, %59, %c0_i32_30 : i32
    scf.if %60 {
      %c0_31 = arith.constant 0 : index
      %c0_32 = arith.constant 0 : index
      %61 = vector.load %arg8[%c0_31, %c0_32] : memref<8x1xf32, #tpu.memory_space<vmem>>, vector<8x1xf32>
      %c0_33 = arith.constant 0 : index
      %c0_34 = arith.constant 0 : index
      %62 = vector.load %arg9[%c0_33, %c0_34] : memref<8x1xf32, #tpu.memory_space<vmem>>, vector<8x1xf32>
      %63 = math.log %62 : vector<8x1xf32>
      %64 = arith.addf %61, %63 : vector<8x1xf32>
      %c0_35 = arith.constant 0 : index
      %c0_36 = arith.constant 0 : index
      %65 = vector.load %arg10[%c0_35, %c0_36] : memref<8x1xf32, #tpu.memory_space<vmem>>, vector<8x1xf32>
      %66 = arith.subf %64, %65 : vector<8x1xf32>
      %c0_37 = arith.constant 0 : index
      %c0_38 = arith.constant 0 : index
      %67 = vector.load %arg5[%c0_37, %c0_38] : memref<8x1xf32, #tpu.memory_space<vmem>>, vector<8x1xf32>
      tpu.vector_store %arg5[%c0_37, %c0_38], %66 {strides = array<i32>} : memref<8x1xf32, #tpu.memory_space<vmem>>, vector<8x1xf32>,
      %68 = tpu.iota {dimensions = array<i32: 0>} : vector<8x1xi32>
      %c8_i32_39 = arith.constant 8 : i32
      %69 = arith.muli %arg0, %c8_i32_39 : i32
      %70 = vector.broadcast %69 : i32 to vector<8x1xi32>
      %71 = arith.addi %68, %70 : vector<8x1xi32>
      %c0_40 = arith.constant 0 : index
      %c0_41 = arith.constant 0 : index
      %72 = vector.load %arg11[%c0_40, %c0_41] : memref<8x1xi32, #tpu.memory_space<vmem>>, vector<8x1xi32>
      %73 = arith.cmpi eq, %72, %71 : vector<8x1xi32>
      %74 = arith.extui %73 : vector<8x1xi1> to vector<8x1xi32>
      %75 = arith.sitofp %74 : vector<8x1xi32> to vector<8x1xf32>
      %c0_42 = arith.constant 0 : index
      %c0_43 = arith.constant 0 : index
      %76 = vector.load %arg6[%c0_42, %c0_43] : memref<8x1xf32, #tpu.memory_space<vmem>>, vector<8x1xf32>
      tpu.vector_store %arg6[%c0_42, %c0_43], %75 {strides = array<i32>} : memref<8x1xf32, #tpu.memory_space<vmem>>, vector<8x1xf32>,
    } else {
    }
    return
  }
  func.func @transform_0(%arg0: i32, %arg1: i32) -> (i32, i32) {
    %c0_i32 = arith.constant 0 : i32
    %c0_i32_0 = arith.constant 0 : i32
    return %arg0, %c0_i32 : i32, i32
  }
  func.func @transform_1(%arg0: i32, %arg1: i32) -> (i32, i32) {
    %c0_i32 = arith.constant 0 : i32
    %c0_i32_0 = arith.constant 0 : i32
    return %arg1, %c0_i32 : i32, i32
  }
  func.func @transform_2(%arg0: i32, %arg1: i32) -> (i32, i32) {
    %c0_i32 = arith.constant 0 : i32
    return %arg0, %arg1 : i32, i32
  }
  func.func @transform_3(%arg0: i32, %arg1: i32) -> (i32, i32) {
    %c0_i32 = arith.constant 0 : i32
    %c0_i32_0 = arith.constant 0 : i32
    return %arg0, %c0_i32 : i32, i32
  }
  func.func @transform_4(%arg0: i32, %arg1: i32) -> (i32, i32) {
    %c0_i32 = arith.constant 0 : i32
    %c0_i32_0 = arith.constant 0 : i32
    return %arg0, %c0_i32 : i32, i32
  }
}

</mosaic_0001>

<llo_original>
// kernel: tpu_custom_call.1
$region0: #{tpu_custom_call.1}
  #allocation0 [shape = 'u32[]', space=smem, size = 0x4, offset = 0x4, fixed_abs, tag = 'smem constant byte address 0x4 - core index']
  #allocation1 [shape = 'u32[144,128]{1,0:T(1,128)}', space=vmem, size = 0x12000, scoped, tag = 'internal scratch']
  #allocation2 [shape = 'f32[8,32]{1,0:T(8,128)}', space=vmem, size = 0x1000, scoped, tag = 'scratch operand']
  #allocation3 [shape = 'f32[8,1]{1,0:T(8,128)}', space=vmem, size = 0x1000, scoped, tag = 'scratch operand']
  #allocation4 [shape = 'f32[8,1]{1,0:T(8,128)}', space=vmem, size = 0x1000, scoped, tag = 'scratch operand']
  #allocation5 [shape = 'f32[8,1]{1,0:T(8,128)}', space=vmem, size = 0x1000, scoped, tag = 'scratch operand']
  #allocation6 [shape = 's32[8,1]{1,0:T(8,128)}', space=vmem, size = 0x1000, scoped, tag = 'scratch operand']
  %s0 = inlined_call_operand.hbm [shape: f32[8,32], index: 0, kind: input, shape index: {}]
  %s1 = inlined_call_operand.hbm [shape: f32[8,32], index: 1, kind: input, shape index: {}]
  %s2 = inlined_call_operand.hbm [shape: f32[8,8], index: 2, kind: output, shape index: {0}]
  %s3 = inlined_call_operand.vmem [shape: f32[8,1], index: 3, kind: output, shape index: {1}]
  %s4 = inlined_call_operand.vmem [shape: f32[8,1], index: 4, kind: output, shape index: {2}]
  %5 = xla_tuple %s2, %s3, %s4
  %s6 = sld [smem:[#allocation0]]
  $region54: #{tpu_custom_call.1} parent=0
    _
  %s8 = ssub.s32 1, %s6
  %s9 = scalar_select 0, %s8, %s6
  $region1: #{tpu_custom_call.1} parent=0
    #allocation7 [shape = 'u8[4096]{0}', space=vmem, size = 0x1000, scoped, tag = 'input window, operand 0, single buffered']
    #allocation8 [shape = 's32[1]{0}', space=sflag, size = 0x4, scoped, tag = 'scoped memory for tpu_custom_call.1']
    #allocation9 [shape = 's32[1]{0}', space=sflag, size = 0x4, scoped, tag = 'scoped memory for tpu_custom_call.1']
    #allocation10 [shape = 'u8[4096]{0}', space=vmem, size = 0x1000, scoped, tag = 'input window, operand 1, single buffered']
    #allocation11 [shape = 's32[1]{0}', space=sflag, size = 0x4, scoped, tag = 'scoped memory for tpu_custom_call.1']
    #allocation12 [shape = 'u8[4096]{0}', space=vmem, size = 0x1000, scoped, tag = 'output window, operand 0, single buffered']
    %10 = vsyncpa [#allocation8], 0
    %11 = vsyncpa [#allocation11], 0
    %12 = vsyncpa [#allocation9], 0
    // Predicated region
    $region2: #{tpu_custom_call.1} parent=1 // pred_check
      _
    $region3: #{tpu_custom_call.1} parent=1 // pred_check_branch
      %14 = sbr.rel (0) target = $region5
    $region4: #{tpu_custom_call.1} parent=1 // pred_region
      %s16 = ssub.s32 128, 128
      %17 = vsyncadd [#allocation8], %s16
      %s19 = sshll.u32 [#allocation7], 4
      %s20 = int_to_ptr.vmem [resolvable:$true] %s19
      %22 = dma.hbm_to_vmem [thread:$0]  %s0, 128, %s20, [#allocation8]
    $region5: #{tpu_custom_call.1} parent=1 // pred_fallthru
      _
    // Predicated region
    $region6: #{tpu_custom_call.1} parent=1 // pred_check
      _
    $region7: #{tpu_custom_call.1} parent=1 // pred_check_branch
      %24 = sbr.rel (0) target = $region9
    $region8: #{tpu_custom_call.1} parent=1 // pred_region
      %s26 = ssub.s32 128, 128
      %27 = vsyncadd [#allocation11], %s26
      %s29 = sshll.u32 [#allocation10], 4
      %s30 = int_to_ptr.vmem [resolvable:$true] %s29
      %32 = dma.hbm_to_vmem [thread:$0]  %s1, 128, %s30, [#allocation11]
    $region9: #{tpu_custom_call.1} parent=1 // pred_fallthru
      _
    // Predicated region
    $region10: #{tpu_custom_call.1} parent=1 // pred_check
      _
    $region11: #{tpu_custom_call.1} parent=1 // pred_check_branch
      %34 = sbr.rel (0) target = $region13
    $region12: #{tpu_custom_call.1} parent=1 // pred_region
      %35 = dma.done [#allocation8], 128
    $region13: #{tpu_custom_call.1} parent=1 // pred_fallthru
      _
    // Predicated region
    $region14: #{tpu_custom_call.1} parent=1 // pred_check
      _
    $region15: #{tpu_custom_call.1} parent=1 // pred_check_branch
      %37 = sbr.rel (0) target = $region17
    $region16: #{tpu_custom_call.1} parent=1 // pred_region
      %38 = dma.done [#allocation11], 128
    $region17: #{tpu_custom_call.1} parent=1 // pred_fallthru
      _
    %p39 = scmp.eq.s32.totalorder 0, 0
    // Predicated region
    $region18: #{tpu_custom_call.1} parent=1 // pred_check
      %p40 = pneg %p39
    $region19: #{tpu_custom_call.1} parent=1 // pred_check_branch
      %42 = sbr.rel (%p40) target = $region21
    $region20: #{tpu_custom_call.1} parent=1 // pred_region
      %v43 = vld [vmem:[#allocation7] sm:$0xff]
      %v44 = vmul.f32 %v43, %v43
      %vm45 = vcmask 261120
      %v46 = vsel %vm45, %v44, 0.0
      %47 = vadd.xlane.f32.xlu0 %v46
      %v48 = vpop.xlane.xlu0 %47
      %v49 = vmax.f32 %v48, 1e-24
      %v50 = vrsqrt.pop %v49
      %v51 = vmul.f32 %v50, 14.285714
      %v52 = vmul.f32 %v43, %v51
      %53 = vst.msk [vmem:[#allocation2] sm:$0xff] %vm45, %v52
      %vm54 = vcmask 7168
      %55 = vst.msk [vmem:[#allocation3] sm:$0xff] %vm54, -inf
      %56 = vst.msk [vmem:[#allocation4] sm:$0xff] %vm54, 0.0
      %57 = vst.msk [vmem:[#allocation5] sm:$0xff] %vm54, 0.0
      %58 = vst.msk [vmem:[#allocation6] sm:$0xff] %vm54, 0
    $region21: #{tpu_custom_call.1} parent=1 // pred_fallthru
      _
    %v59 = vld [vmem:[#allocation10] sm:$0xff]
    %v60 = vmul.f32 %v59, %v59
    %vm61 = vcmask 261120
    %v62 = vsel %vm61, %v60, 0.0
    %63 = vadd.xlane.f32.xlu0 %v62
    %v64 = vpop.xlane.xlu0 %63
    %v65 = vmax.f32 %v64, 1e-24
    %v66 = vrsqrt.pop %v65
    %v67 = vmul.f32 %v59, %v66
    %v68 = vld [vmem:[#allocation2] sm:$0xff]
    %v70 = vsel %vm61, %v68, 0
    %v73 = vsel %vm61, %v67, 0
    %75 = vmatprep.subr.mxu0 0.0
    %76 = vmatpush1.xpose.msra.mxu0 %v73
    %77 = vmatprep.subr.mxu0 0.0
    %78 = vmatpush1.xpose.msra.mxu0 0.0
    %79 = vmatprep.subr.mxu0 0.0
    %80 = vmatpush1.xpose.msra.mxu0 0.0
    %81 = vmatprep.subr.mxu0 0.0
    %82 = vmatpush1.xpose.msra.mxu0 0.0
    %83 = vmatprep.subr.mxu0 0.0
    %84 = vmatpush1.xpose.msra.mxu0 0.0
    %85 = vmatprep.subr.mxu0 0.0
    %86 = vmatpush1.xpose.msra.mxu0 0.0
    %87 = vmatprep.subr.mxu0 0.0
    %88 = vmatpush1.xpose.msra.mxu0 0.0
    %89 = vmatprep.subr.mxu0 0.0
    %90 = vmatpush1.xpose.msra.mxu0 0.0
    %91 = vmatprep.subr.mxu0 0.0
    %92 = vmatpush1.xpose.msra.mxu0 0.0
    %93 = vmatprep.subr.mxu0 0.0
    %94 = vmatpush1.xpose.msra.mxu0 0.0
    %95 = vmatprep.subr.mxu0 0.0
    %96 = vmatpush1.xpose.msra.mxu0 0.0
    %97 = vmatprep.subr.mxu0 0.0
    %98 = vmatpush1.xpose.msra.mxu0 0.0
    %99 = vmatprep.subr.mxu0 0.0
    %100 = vmatpush1.xpose.msra.mxu0 0.0
    %101 = vmatprep.subr.mxu0 0.0
    %102 = vmatpush1.xpose.msra.mxu0 0.0
    %103 = vmatprep.subr.mxu0 0.0
    %104 = vmatpush1.xpose.msra.mxu0 0.0
    %105 = vmatprep.subr.mxu0 0.0
    %106 = vmatpush1.xpose.msra.mxu0 0.0
    %107 = vmatprep.subr.mxu0 0.0
    %108 = vmatpush1.xpose.msra.mxu0 0.0
    %109 = vmatprep.subr.mxu0 0.0
    %110 = vmatpush1.xpose.msra.mxu0 0.0
    %111 = vmatprep.subr.mxu0 0.0
    %112 = vmatpush1.xpose.msra.mxu0 0.0
    %113 = vmatprep.subr.mxu0 0.0
    %114 = vmatpush1.xpose.msra.mxu0 0.0
    %115 = vmatprep.subr.mxu0 0.0
    %116 = vmatpush1.xpose.msra.mxu0 0.0
    %117 = vmatprep.subr.mxu0 0.0
    %118 = vmatpush1.xpose.msra.mxu0 0.0
    %119 = vmatprep.subr.mxu0 0.0
    %120 = vmatpush1.xpose.msra.mxu0 0.0
    %121 = vmatprep.subr.mxu0 0.0
    %122 = vmatpush1.xpose.msra.mxu0 0.0
    %123 = vmatprep.subr.mxu0 0.0
    %124 = vmatpush1.xpose.msra.mxu0 0.0
    %125 = vmatprep.subr.mxu0 0.0
    %126 = vmatpush1.xpose.msra.mxu0 0.0
    %127 = vmatprep.subr.mxu0 0.0
    %128 = vmatpush1.xpose.msra.mxu0 0.0
    %129 = vmatprep.subr.mxu0 0.0
    %130 = vmatpush1.xpose.msra.mxu0 0.0
    %131 = vmatprep.subr.mxu0 0.0
    %132 = vmatpush1.xpose.msra.mxu0 0.0
    %133 = vmatprep.subr.mxu0 0.0
    %134 = vmatpush1.xpose.msra.mxu0 0.0
    %135 = vmatprep.subr.mxu0 0.0
    %136 = vmatpush1.xpose.msra.mxu0 0.0
    %137 = vmatprep.subr.mxu0 0.0
    %138 = vmatpush1.xpose.msra.mxu0 0.0
    %139 = vmatprep.mubr.f32.mxu0 0.0
    %140 = vmatmul.mubr.f32.gmra.mrb[0].mxu0 %v70
    %v141 = vpop.f32.mrb[0].mxu0
    %v142 = vadd.f32 0.0, %v141
    %v143 = vpop.f32.mrb[0].mxu0
    %144 = vdwg.mxu0
    %vm145 = vcmask 64512
    %146 = vst.msk [vmem:[#allocation12] sm:$0xff] %vm145, %v142
    %v147 = vlaneseq
    %v148 = vand.u32 %v147, 127
    %s149 = smul.u32 0, 8
    %v150 = vstv %s149
    %v151 = vadd.s32 %v148, %v150
    %v152 = vlaneseq
    %v153 = vshrl.u32 %v152, 7
    %s154 = smul.u32 0, 8
    %v155 = vstv %s154
    %v156 = vadd.s32 %v153, %v155
    %s157 = sadd.s32 %s149, 8
    %p158 = scmp.lt.s32.totalorder %s154, %s157
    %s159 = sadd.s32 %s154, 8
    %p160 = scmp.lt.s32.totalorder %s149, %s159
    %p161 = pnand %p158, %p160
    %p162 = pneg %p161
    // Predicated region
    $region22: #{tpu_custom_call.1} parent=1 // pred_check
      _
    $region23: #{tpu_custom_call.1} parent=1 // pred_check_branch
      %164 = sbr.rel (%p161) target = $region25
    $region24: #{tpu_custom_call.1} parent=1 // pred_region
      %v165 = vld [vmem:[#allocation5] sm:$0xff]
      %vm166 = vcmp.eq.s32.totalorder %v151, %v156
      %v167 = vsel %vm166, %v142, 0.0
      %v168 = vsel %vm145, %v167, 0.0
      %169 = vadd.xlane.f32.xlu0 %v168
      %v170 = vpop.xlane.xlu0 %169
      %v171 = vadd.f32 %v165, %v170
      %vm172 = vcmask 7168
      %173 = vst.msk [vmem:[#allocation5] sm:$0xff] %vm172, %v171
    $region25: #{tpu_custom_call.1} parent=1 // pred_fallthru
      _
    %v174 = vsel %vm145, %v142, -inf
    %175 = vmax.xlane.f32.xlu0 %v174
    %v176 = vpop.xlane.xlu0 %175
    %vm177 = vcmp.eq.f32.partialorder %v142, %v176
    %v178 = vsel %vm177, %v151, 2147483647
    %v179 = vsel %vm145, %v178, 2147483647
    %v180 = vand.u32 %v179, 65535
    %v181 = vshra.s32 %v179, 16
    %v182 = vcvt.s32.f32 %v180
    %v183 = vcvt.s32.f32 %v181
    %184 = vmin.xlane.f32.xlu0 %v183
    %v185 = vpop.xlane.xlu0 %184
    %vm186 = vcmp.eq.f32.partialorder %v183, %v185
    %v187 = vsel %vm186, %v182, inf
    %188 = vmin.xlane.f32.xlu0 %v187
    %v189 = vpop.xlane.xlu0 %188
    %v190 = vcvt.f32.s32 %v189
    %v191 = vcvt.f32.s32 %v185
    %v192 = vshll.u32 %v191, 16
    %v193 = vadd.s32 %v192, %v190
    %v194 = vld [vmem:[#allocation3] sm:$0xff]
    %vm195 = vcmp.gt.f32.partialorder %v176, %v194
    %v196 = vld [vmem:[#allocation6] sm:$0xff]
    %v197 = vsel %vm195, %v193, %v196
    %vm198 = vcmask 7168
    %199 = vst.msk [vmem:[#allocation6] sm:$0xff] %vm198, %v197
    %v200 = vmax.f32 %v194, %v176
    %v201 = vld [vmem:[#allocation4] sm:$0xff]
    %v202 = vsub.f32 %v194, %v200
    %v203 = vmul.f32 %v202, 1.442695
    %v204 = vpow.pop %v203
    %v205 = vmul.f32 %v201, %v204
    %207 = vset.pattern.permute.xlu0 0
    %208 = vperm.xlu0 %207, %v200
    %v209 = vpop.permute.xlu0 %208
    %v211 = vsub.f32 %v142, %v209
    %v212 = vmul.f32 %v211, 1.442695
    %v213 = vpow.pop %v212
    %v214 = vsel %vm145, %v213, 0.0
    %215 = vadd.xlane.f32.xlu0 %v214
    %v216 = vpop.xlane.xlu0 %215
    %v217 = vadd.f32 %v205, %v216
    %218 = vst.msk [vmem:[#allocation4] sm:$0xff] %vm198, %v217
    %219 = vst.msk [vmem:[#allocation3] sm:$0xff] %vm198, %v200
    // Predicated region
    $region26: #{tpu_custom_call.1} parent=1 // pred_check
      %p220 = pneg %p39
    $region27: #{tpu_custom_call.1} parent=1 // pred_check_branch
      %222 = sbr.rel (%p220) target = $region29
    $region28: #{tpu_custom_call.1} parent=1 // pred_region
      %v223 = vld [vmem:[#allocation3] sm:$0xff]
      %v224 = vld [vmem:[#allocation4] sm:$0xff]
      %v225 = vlog2.pop %v224
      %v226 = vmul.f32 %v225, 0.6931472
      %v227 = vadd.f32 %v223, %v226
      %v228 = vld [vmem:[#allocation5] sm:$0xff]
      %v229 = vsub.f32 %v227, %v228
      %230 = vst.msk [vmem:[%s3] sm:$0xff] %vm198, %v229
      %v231 = vld [vmem:[#allocation6] sm:$0xff]
      %vm232 = vcmp.eq.s32.totalorder %v231, %v156
      %v233 = vsel %vm232, 1, 0
      %v234 = vcvt.s32.f32 %v233
      %235 = vst.msk [vmem:[%s4] sm:$0xff] %vm198, %v234
    $region29: #{tpu_custom_call.1} parent=1 // pred_fallthru
      _
    // Predicated region
    $region30: #{tpu_custom_call.1} parent=1 // pred_check
      _
    $region31: #{tpu_custom_call.1} parent=1 // pred_check_branch
      %237 = sbr.rel (0) target = $region33
    $region32: #{tpu_custom_call.1} parent=1 // pred_region
      %s239 = ssub.s32 128, 128
      %240 = vsyncadd [#allocation9], %s239
      %s242 = sshll.u32 [#allocation12], 4
      %s243 = int_to_ptr.vmem [resolvable:$true] %s242
      %245 = dma.vmem_to_hbm [thread:$0]  %s243, 128, %s2, [#allocation9]
    $region33: #{tpu_custom_call.1} parent=1 // pred_fallthru
      _
    // Predicated region
    $region34: #{tpu_custom_call.1} parent=1 // pred_check
      _
    $region35: #{tpu_custom_call.1} parent=1 // pred_check_branch
      %247 = sbr.rel (0) target = $region37
    $region36: #{tpu_custom_call.1} parent=1 // pred_region
      _
    $region37: #{tpu_custom_call.1} parent=1 // pred_fallthru
      _
    // Predicated region
    $region38: #{tpu_custom_call.1} parent=1 // pred_check
      _
    $region39: #{tpu_custom_call.1} parent=1 // pred_check_branch
      %249 = sbr.rel (0) target = $region41
    $region40: #{tpu_custom_call.1} parent=1 // pred_region
      _
    $region41: #{tpu_custom_call.1} parent=1 // pred_fallthru
      _
    // Predicated region
    $region42: #{tpu_custom_call.1} parent=1 // pred_check
      _
    $region43: #{tpu_custom_call.1} parent=1 // pred_check_branch
      %251 = sbr.rel (0) target = $region45
    $region44: #{tpu_custom_call.1} parent=1 // pred_region
      %252 = dma.done [#allocation9], 128
    $region45: #{tpu_custom_call.1} parent=1 // pred_fallthru
      _
    // Predicated region
    $region46: #{tpu_custom_call.1} parent=1 // pred_check
      _
    $region47: #{tpu_custom_call.1} parent=1 // pred_check_branch
      %254 = sbr.rel (0) target = $region49
    $region48: #{tpu_custom_call.1} parent=1 // pred_region
      _
    $region49: #{tpu_custom_call.1} parent=1 // pred_fallthru
      _
    // Predicated region
    $region50: #{tpu_custom_call.1} parent=1 // pred_check
      _
    $region51: #{tpu_custom_call.1} parent=1 // pred_check_branch
      %256 = sbr.rel (0) target = $region53
    $region52: #{tpu_custom_call.1} parent=1 // pred_region
      _
    $region53: #{tpu_custom_call.1} parent=1 // pred_fallthru
      _
    %257 = vsyncpa [#allocation8], 1
    %258 = vsyncpa [#allocation11], 1
    %259 = vsyncpa [#allocation9], 1

</llo_original>
